<compile_context>
chip_gen: v7x
topology: tpu7x:2x2x1
jax: 0.10.0
libtpu: 0.0.40
codegen_flags: <defaults>
</compile_context>

<pallas_src>
import jax
import jax.numpy as jnp
from jax.experimental import pallas as pl
from jax.experimental.pallas import tpu as pltpu

_LANES = 128
_SUBLANES = 8
# Lane width of the flattened slab: multiple of 128 -> unmasked, lane-dense
# loads; 4 lane-groups keeps the in-kernel lane fold a tiny unrolled add chain.
_L = 512
# Max rows per tile: 4096 x 512 f32 = 8 MiB/buffer (16 MiB double-buffered).
# Fits scoped-VMEM defaults on v6e/v7x and the 32 MiB limit requested below.
# TODO(synk): per-generation sweep (v7x's higher HBM BW prefers larger tiles;
# v5e has 128 MiB VMEM and could go bigger still).
_MAX_ROWS = 4096


def _cdiv(a, b):
    return -(-a // b)


def _round_up(a, b):
    return ((a + b - 1) // b) * b


def _entropy_partial_kernel(x_ref, o_ref):
    # x_ref: (row_block, _L) tile of the flattened input.
    x = x_ref[...].astype(jnp.float32)
    xlogx = x * jnp.log(x)  # VPU mul + EUP log (matches torch: 0*log0 = NaN)

    rb, width = xlogx.shape
    # Fold the lane axis to a single 128-lane group with vreg-aligned static
    # slices (pure VPU adds, no relayout).
    acc = xlogx[:, 0:_LANES]
    for g in range(1, width // _LANES):
        acc = acc + xlogx[:, g * _LANES:(g + 1) * _LANES]  # (rb, 128)
    # Fold the row axis down to 8 sublanes.  The reshape is (8,128)-tile
    # aligned (a view, no relayout); the leading-axis sum is vreg adds.
    acc = acc.reshape(rb // _SUBLANES, _SUBLANES, _LANES).sum(axis=0)  # (8,128)
    # Per-block vreg-shaped partial sum; final reduce / negate / mean is done
    # once in the JAX wrapper.
    o_ref[...] = acc[None]


def entropy_loss(x):
    """Pallas EntropyLoss.forward: mean(-sum(x * log(x), dim=1))."""
    assert x.ndim >= 2
    total = x.size
    # mean(-sum(x*log x, dim=1)) == -sum(all elements) / (numel / dim1_size)
    denom = total // x.shape[1]

    # Flatten to a lane-dense (rows, _L) slab, padded with 1.0 (1*log1 == 0).
    flat = x.reshape(-1)
    rows = _cdiv(total, _L)
    nblocks = _cdiv(rows, _MAX_ROWS)
    row_block = _round_up(_cdiv(rows, nblocks), _SUBLANES)
    padded_rows = nblocks * row_block
    pad = padded_rows * _L - total
    if pad:
        flat = jnp.pad(flat, (0, pad), mode="constant", constant_values=1)
    x2 = flat.reshape(padded_rows, _L)

    grid = (padded_rows // row_block,)
    partials = pl.pallas_call(
        _entropy_partial_kernel,
        out_shape=jax.ShapeDtypeStruct((grid[0], _SUBLANES, _LANES), jnp.float32),
        grid_spec=pltpu.PrefetchScalarGridSpec(
            num_scalar_prefetch=0,
            grid=grid,
            in_specs=[pl.BlockSpec((row_block, _L), lambda i: (i, 0))],
            out_specs=pl.BlockSpec((1, _SUBLANES, _LANES), lambda i: (i, 0, 0)),
        ),
        compiler_params=pltpu.CompilerParams(
            # Each step writes a disjoint partial block -> safe to shard the
            # row axis across TensorCores (megacore on v7x).
            dimension_semantics=("parallel",),
            vmem_limit_bytes=32 * 1024 * 1024,
        ),
    )(x2)

    # Tiny epilogue in XLA: sum of grid*1024 f32 partials, negate, mean.
    return -jnp.sum(partials) / jnp.float32(denom)


if __name__ == "__main__":
    key = jax.random.PRNGKey(0)
    N, C = 16, 32  # small MoE-gate-like shape: batch x num_experts
    logits = jax.random.normal(key, (N, C), dtype=jnp.float32)
    x = jax.nn.softmax(logits, axis=1)  # positive probabilities (log finite)

    out = jax.block_until_ready(entropy_loss(x))

    # Pure-JAX reference of the PyTorch forward.
    ref = jnp.mean(-jnp.sum(x * jnp.log(x), axis=1))
    assert jnp.allclose(out, ref, rtol=1e-5, atol=1e-6), (out, ref)

    print("KERNEL_OK")
</pallas_src>

<mosaic_0001>
module attributes {stable_mosaic.version = 11 : i64} {
  func.func @_entropy_partial_kernel(%arg0: i32, %arg1: memref<8x512xf32, #tpu.memory_space<vmem>>, %arg2: memref<1x8x128xf32, #tpu.memory_space<vmem>>) attributes {dimension_semantics = [#tpu.dimension_semantics<parallel>], iteration_bounds = array<i64: 1>, scalar_prefetch = 0 : i64, scratch_operands = 0 : i64, tpu.core_type = #tpu.core_type<tc>, window_params = [{transform_indices = @transform_0, window_bounds = array<i64: 8, 512>}, {transform_indices = @transform_1, window_bounds = array<i64: 1, 8, 128>}]} {
    %c0 = arith.constant 0 : index
    %c0_0 = arith.constant 0 : index
    %0 = vector.load %arg1[%c0, %c0_0] : memref<8x512xf32, #tpu.memory_space<vmem>>, vector<8x512xf32>
    %1 = math.log %0 : vector<8x512xf32>
    %2 = arith.mulf %0, %1 : vector<8x512xf32>
    %3 = vector.extract_strided_slice %2 {offsets = [0, 0], sizes = [8, 128], strides = [1, 1]} : vector<8x512xf32> to vector<8x128xf32>
    %4 = vector.extract_strided_slice %2 {offsets = [0, 128], sizes = [8, 128], strides = [1, 1]} : vector<8x512xf32> to vector<8x128xf32>
    %5 = arith.addf %3, %4 : vector<8x128xf32>
    %6 = vector.extract_strided_slice %2 {offsets = [0, 256], sizes = [8, 128], strides = [1, 1]} : vector<8x512xf32> to vector<8x128xf32>
    %7 = arith.addf %5, %6 : vector<8x128xf32>
    %8 = vector.extract_strided_slice %2 {offsets = [0, 384], sizes = [8, 128], strides = [1, 1]} : vector<8x512xf32> to vector<8x128xf32>
    %9 = arith.addf %7, %8 : vector<8x128xf32>
    %10 = vector.shape_cast %9 : vector<8x128xf32> to vector<1x8x128xf32>
    %cst = arith.constant dense<0.000000e+00> : vector<8x128xf32>
    %11 = vector.multi_reduction <add>, %10, %cst [0] : vector<1x8x128xf32> to vector<8x128xf32>
    %12 = vector.shape_cast %11 : vector<8x128xf32> to vector<1x8x128xf32>
    %c0_1 = arith.constant 0 : index
    %c0_2 = arith.constant 0 : index
    %c0_3 = arith.constant 0 : index
    %13 = vector.load %arg2[%c0_1, %c0_2, %c0_3] : memref<1x8x128xf32, #tpu.memory_space<vmem>>, vector<1x8x128xf32>
    tpu.vector_store %arg2[%c0_1, %c0_2, %c0_3], %12 {strides = array<i32>} : memref<1x8x128xf32, #tpu.memory_space<vmem>>, vector<1x8x128xf32>,
    return
  }
  func.func @transform_0(%arg0: i32) -> (i32, i32) {
    %c0_i32 = arith.constant 0 : i32
    %c0_i32_0 = arith.constant 0 : i32
    return %arg0, %c0_i32 : i32, i32
  }
  func.func @transform_1(%arg0: i32) -> (i32, i32, i32) {
    %c0_i32 = arith.constant 0 : i32
    %c0_i32_0 = arith.constant 0 : i32
    %c0_i32_1 = arith.constant 0 : i32
    return %arg0, %c0_i32, %c0_i32_0 : i32, i32, i32
  }
}

</mosaic_0001>

<llo_original>
// kernel: tpu_custom_call.1
$region0: #{tpu_custom_call.1}
  #allocation0 [shape = 'u32[]', space=smem, size = 0x4, offset = 0x4, fixed_abs, tag = 'smem constant byte address 0x4 - core index']
  #allocation1 [shape = 'u32[144,128]{1,0:T(1,128)}', space=vmem, size = 0x12000, scoped, tag = 'internal scratch']
  %s0 = inlined_call_operand.hbm [shape: f32[8,512], index: 0, kind: input, shape index: {}]
  %s1 = inlined_call_operand.hbm [shape: f32[1,8,128], index: 1, kind: output, shape index: {}]
  %s2 = sld [smem:[#allocation0]]
  $region18: #{tpu_custom_call.1} parent=0
    _
  %s4 = ssub.s32 1, %s2
  %s5 = scalar_select 0, %s4, %s2
  $region1: #{tpu_custom_call.1} parent=0
    #allocation2 [shape = 'u8[16384]{0}', space=vmem, size = 0x4000, scoped, tag = 'input window, operand 0, single buffered']
    #allocation3 [shape = 's32[1]{0}', space=sflag, size = 0x4, scoped, tag = 'scoped memory for tpu_custom_call.1']
    #allocation4 [shape = 's32[1]{0}', space=sflag, size = 0x4, scoped, tag = 'scoped memory for tpu_custom_call.1']
    #allocation5 [shape = 'u8[4096]{0}', space=vmem, size = 0x1000, scoped, tag = 'output window, operand 0, single buffered']
    %6 = vsyncpa [#allocation3], 0
    %7 = vsyncpa [#allocation4], 0
    // Predicated region
    $region2: #{tpu_custom_call.1} parent=1 // pred_check
      _
    $region3: #{tpu_custom_call.1} parent=1 // pred_check_branch
      %9 = sbr.rel (0) target = $region5
    $region4: #{tpu_custom_call.1} parent=1 // pred_region
      %s11 = ssub.s32 512, 512
      %12 = vsyncadd [#allocation3], %s11
      %s14 = sshll.u32 [#allocation2], 4
      %s15 = int_to_ptr.vmem [resolvable:$true] %s14
      %17 = dma.hbm_to_vmem [thread:$0]  %s0, 512, %s15, [#allocation3]
    $region5: #{tpu_custom_call.1} parent=1 // pred_fallthru
      _
    // Predicated region
    $region6: #{tpu_custom_call.1} parent=1 // pred_check
      _
    $region7: #{tpu_custom_call.1} parent=1 // pred_check_branch
      %19 = sbr.rel (0) target = $region9
    $region8: #{tpu_custom_call.1} parent=1 // pred_region
      %20 = dma.done [#allocation3], 512
    $region9: #{tpu_custom_call.1} parent=1 // pred_fallthru
      _
    %v21 = vld [vmem:[#allocation2] sm:$0xff]
    %v22 = vld [vmem:[#allocation2 + $0x8] sm:$0xff]
    %v23 = vld [vmem:[#allocation2 + $0x10] sm:$0xff]
    %v24 = vld [vmem:[#allocation2 + $0x18] sm:$0xff]
    %v25 = vlog2.pop %v21
    %v26 = vmul.f32 %v25, 0.6931472
    %v27 = vlog2.pop %v22
    %v28 = vmul.f32 %v27, 0.6931472
    %v29 = vlog2.pop %v23
    %v30 = vmul.f32 %v29, 0.6931472
    %v31 = vlog2.pop %v24
    %v32 = vmul.f32 %v31, 0.6931472
    %v33 = vmul.f32 %v21, %v26
    %v34 = vmul.f32 %v22, %v28
    %v35 = vmul.f32 %v23, %v30
    %v36 = vmul.f32 %v24, %v32
    %v37 = vadd.f32 %v33, %v34
    %v38 = vadd.f32 %v37, %v35
    %v39 = vadd.f32 %v38, %v36
    %v40 = vadd.f32 %v39, 0.0
    %41 = vst [vmem:[#allocation5] sm:$0xff] %v40
    // Predicated region
    $region10: #{tpu_custom_call.1} parent=1 // pred_check
      _
    $region11: #{tpu_custom_call.1} parent=1 // pred_check_branch
      %43 = sbr.rel (0) target = $region13
    $region12: #{tpu_custom_call.1} parent=1 // pred_region
      %s45 = ssub.s32 128, 128
      %46 = vsyncadd [#allocation4], %s45
      %s48 = sshll.u32 [#allocation5], 4
      %s49 = int_to_ptr.vmem [resolvable:$true] %s48
      %51 = dma.vmem_to_hbm [thread:$0]  %s49, 128, %s1, [#allocation4]
    $region13: #{tpu_custom_call.1} parent=1 // pred_fallthru
      _
    // Predicated region
    $region14: #{tpu_custom_call.1} parent=1 // pred_check
      _
    $region15: #{tpu_custom_call.1} parent=1 // pred_check_branch
      %53 = sbr.rel (0) target = $region17
    $region16: #{tpu_custom_call.1} parent=1 // pred_region
      %54 = dma.done [#allocation4], 128
    $region17: #{tpu_custom_call.1} parent=1 // pred_fallthru
      _
    %55 = vsyncpa [#allocation3], 1
    %56 = vsyncpa [#allocation4], 1

</llo_original>
